<compile_context>
chip_gen: v5e
topology: v5e:2x2
jax: 0.10.0
libtpu: 0.0.40
codegen_flags: <defaults>
</compile_context>

<pallas_src>
import functools
from typing import Optional, Tuple, Union

import jax
import jax.numpy as jnp
import numpy as np
from jax.experimental import pallas as pl
from jax.experimental.pallas import tpu as pltpu

IntOrPair = Union[int, Tuple[int, int]]

# Per-grid-step VMEM budget (bytes), counting double-buffered in/out blocks + scratch.
_VMEM_BUDGET = 12 * 1024 * 1024


def _force_pair(v: IntOrPair) -> Tuple[int, int]:
    if isinstance(v, (tuple, list)):
        assert len(v) == 2
        return int(v[0]), int(v[1])
    return int(v), int(v)


def _choose_lane_block(bc: int, per_lane_bytes: int,
                       budget: int = _VMEM_BUDGET, min_steps: int = 2) -> int:
    """How many (batch*channel) lanes each grid step processes.

    The lane block must be a multiple of 128 unless it equals the full B*C axis.
    Pick the biggest block that fits the VMEM budget while (if possible) keeping
    >= min_steps grid steps so a 2-TensorCore chip (v7x) can shard the grid.
    """
    if bc % 128 != 0:
        return bc  # single lane block == full array dim (allowed by tiling rules)
    divisors = [c for c in range(128, bc + 1, 128) if bc % c == 0]
    fitting = [c for c in divisors if c * per_lane_bytes <= budget] or [128]
    preferred = [c for c in fitting if bc // c >= min_steps]
    return max(preferred) if preferred else max(fitting)


def _maxpool_kernel(x_ref, o_ref, *scratch, kh, kw, sh, sw, oh, ow, ph, pw, fill):
    # x_ref: (H, W, TBC) lane-dense slab; o_ref: (oh, ow, TBC).
    H, W = x_ref.shape[0], x_ref.shape[1]
    if ph == 0 and pw == 0:
        src = x_ref
    else:
        # Build the padded slab in VMEM only (no extra HBM pass for padding).
        pad_ref = scratch[0]
        pad_ref[...] = jnp.full(pad_ref.shape, fill, pad_ref.dtype)
        pad_ref[pl.ds(ph, H), pl.ds(pw, W), :] = x_ref[...]
        src = pad_ref

    # Static double loop over the pooling window.  Each read covers every output
    # position at once; strides touch only the leading (H) and sublane (W) dims,
    # the 128-lane channel axis stays contiguous.  Accumulate in the input dtype
    # (max is exact), seeded from the (0, 0) window.
    res = src[pl.ds(0, oh, stride=sh), pl.ds(0, ow, stride=sw), :]
    for i in range(kh):
        for j in range(kw):
            if i == 0 and j == 0:
                continue
            win = src[pl.ds(i, oh, stride=sh), pl.ds(j, ow, stride=sw), :]
            res = jnp.maximum(res, win)
    o_ref[...] = res.astype(o_ref.dtype)


def maxpool2d(x: jax.Array,
              kernel_size: IntOrPair,
              stride: Optional[IntOrPair] = None,
              padding: IntOrPair = 0) -> jax.Array:
    """Pallas equivalent of the reference maxpool2d. x: (batch, channels, H, W)."""
    kh, kw = _force_pair(kernel_size)
    if stride is None:
        stride = kernel_size
    sh, sw = _force_pair(stride)
    ph, pw = _force_pair(padding)

    B, C, H, W = x.shape
    Hp, Wp = H + 2 * ph, W + 2 * pw
    oh = (Hp - kh) // sh + 1
    ow = (Wp - kw) // sw + 1
    BC = B * C

    dtype = x.dtype
    if jnp.issubdtype(dtype, jnp.floating):
        fill = float("-inf")
    else:
        fill = int(jnp.iinfo(dtype).min)

    # Lane-dense relayout (layout plumbing): channels on the 128-lane axis.
    x_t = jnp.transpose(x.reshape(BC, H, W), (1, 2, 0))  # (H, W, BC)

    itemsize = jnp.dtype(dtype).itemsize
    need_pad = (ph != 0) or (pw != 0)
    per_lane = (2 * H * W + 2 * oh * ow + (Hp * Wp if need_pad else 0)) * itemsize
    tbc = _choose_lane_block(BC, per_lane)
    grid = (BC // tbc,)

    kernel = functools.partial(_maxpool_kernel, kh=kh, kw=kw, sh=sh, sw=sw,
                               oh=oh, ow=ow, ph=ph, pw=pw, fill=fill)

    scratch_shapes = [pltpu.VMEM((Hp, Wp, tbc), dtype)] if need_pad else []

    cparams = {"dimension_semantics": ("parallel",)}
    step_bytes = per_lane * tbc
    if step_bytes > _VMEM_BUDGET:
        # Very large spatial slabs: request more scoped VMEM with some headroom.
        cparams["vmem_limit_bytes"] = int(step_bytes * 1.25)

    out_t = pl.pallas_call(
        kernel,
        out_shape=jax.ShapeDtypeStruct((oh, ow, BC), dtype),
        grid_spec=pltpu.PrefetchScalarGridSpec(
            num_scalar_prefetch=0,
            grid=grid,
            in_specs=[pl.BlockSpec((H, W, tbc), lambda i: (0, 0, i))],
            out_specs=pl.BlockSpec((oh, ow, tbc), lambda i: (0, 0, i)),
            scratch_shapes=scratch_shapes,
        ),
        compiler_params=pltpu.CompilerParams(**cparams),
    )(x_t)

    # Back to NCHW.
    return jnp.transpose(out_t, (2, 0, 1)).reshape(B, C, oh, ow)


class MaxPool2d:
    """Mirror of the reference nn.Module (no parameters)."""

    def __init__(self, kernel_size: IntOrPair,
                 stride: Optional[IntOrPair] = None,
                 padding: IntOrPair = 1):
        self.kernel_size = kernel_size
        self.stride = kernel_size if stride is None else stride
        self.padding = padding

    def __call__(self, x: jax.Array) -> jax.Array:
        return maxpool2d(x, self.kernel_size, self.stride, self.padding)

    def extra_repr(self) -> str:
        return (f"maxpool2d: Kernel size : {self.kernel_size}, "
                f"Stride: {self.stride}, Padding: {self.padding}")


def _reference_maxpool(x, kernel_size, stride, padding):
    kh, kw = _force_pair(kernel_size)
    sh, sw = _force_pair(stride)
    ph, pw = _force_pair(padding)
    return jax.lax.reduce_window(
        x, -jnp.inf, jax.lax.max,
        window_dimensions=(1, 1, kh, kw),
        window_strides=(1, 1, sh, sw),
        padding=((0, 0), (0, 0), (ph, ph), (pw, pw)),
    )


if __name__ == "__main__":
    key = jax.random.PRNGKey(0)
    # Small NCHW input: batch=2, channels=4, spatial=16x16.
    x = jax.random.normal(key, (2, 4, 16, 16), dtype=jnp.float32)

    # ResNet-style maxpool: kernel 3, stride 2, padding 1 (module default padding=1).
    pool = MaxPool2d(kernel_size=3, stride=2, padding=1)
    out = jax.block_until_ready(pool(x))
    ref = _reference_maxpool(x, pool.kernel_size, pool.stride, pool.padding)
    np.testing.assert_allclose(np.asarray(out), np.asarray(ref), rtol=0, atol=0)
    assert out.shape == (2, 4, 8, 8)

    # Also exercise the no-padding path (stride defaults to kernel_size).
    out2 = jax.block_until_ready(maxpool2d(x, kernel_size=2, stride=None, padding=0))
    ref2 = _reference_maxpool(x, 2, 2, 0)
    np.testing.assert_allclose(np.asarray(out2), np.asarray(ref2), rtol=0, atol=0)
    assert out2.shape == (2, 4, 8, 8)

    print("KERNEL_OK")
</pallas_src>

<mosaic_0001>
module attributes {stable_mosaic.version = 11 : i64} {
  func.func @_maxpool_kernel(%arg0: i32, %arg1: memref<16x16x8xf32, #tpu.memory_space<vmem>>, %arg2: memref<8x8x8xf32, #tpu.memory_space<vmem>>, %arg3: memref<18x18x8xf32, #tpu.memory_space<vmem>>) attributes {dimension_semantics = [#tpu.dimension_semantics<parallel>], iteration_bounds = array<i64: 1>, scalar_prefetch = 0 : i64, scratch_operands = 1 : i64, tpu.core_type = #tpu.core_type<tc>, window_params = [{transform_indices = @transform_0, window_bounds = array<i64: 16, 16, 8>}, {transform_indices = @transform_1, window_bounds = array<i64: 8, 8, 8>}]} {
    %cst = arith.constant 0xFF800000 : f32
    %0 = vector.broadcast %cst : f32 to vector<18x18x8xf32>
    %c0 = arith.constant 0 : index
    %c0_0 = arith.constant 0 : index
    %c0_1 = arith.constant 0 : index
    %1 = vector.load %arg3[%c0, %c0_0, %c0_1] : memref<18x18x8xf32, #tpu.memory_space<vmem>>, vector<18x18x8xf32>
    tpu.vector_store %arg3[%c0, %c0_0, %c0_1], %0 {strides = array<i32>} : memref<18x18x8xf32, #tpu.memory_space<vmem>>, vector<18x18x8xf32>,
    %c0_2 = arith.constant 0 : index
    %c0_3 = arith.constant 0 : index
    %c0_4 = arith.constant 0 : index
    %2 = vector.load %arg1[%c0_2, %c0_3, %c0_4] : memref<16x16x8xf32, #tpu.memory_space<vmem>>, vector<16x16x8xf32>
    %c1 = arith.constant 1 : index
    %c1_5 = arith.constant 1 : index
    %c0_6 = arith.constant 0 : index
    %3 = vector.load %arg3[%c1, %c1_5, %c0_6] : memref<18x18x8xf32, #tpu.memory_space<vmem>>, vector<16x16x8xf32>
    tpu.vector_store %arg3[%c1, %c1_5, %c0_6], %2 {strides = array<i32>} : memref<18x18x8xf32, #tpu.memory_space<vmem>>, vector<16x16x8xf32>,
    %c0_7 = arith.constant 0 : index
    %c0_8 = arith.constant 0 : index
    %c0_9 = arith.constant 0 : index
    %4 = tpu.strided_load %arg3[%c0_7, %c0_8, %c0_9] {strides = array<i32: 2, 2, 1>} : memref<18x18x8xf32, #tpu.memory_space<vmem>>, vector<8x8x8xf32>
    %c0_10 = arith.constant 0 : index
    %c1_11 = arith.constant 1 : index
    %c0_12 = arith.constant 0 : index
    %5 = tpu.strided_load %arg3[%c0_10, %c1_11, %c0_12] {strides = array<i32: 2, 2, 1>} : memref<18x18x8xf32, #tpu.memory_space<vmem>>, vector<8x8x8xf32>
    %6 = arith.maximumf %4, %5 : vector<8x8x8xf32>
    %c0_13 = arith.constant 0 : index
    %c2 = arith.constant 2 : index
    %c0_14 = arith.constant 0 : index
    %7 = tpu.strided_load %arg3[%c0_13, %c2, %c0_14] {strides = array<i32: 2, 2, 1>} : memref<18x18x8xf32, #tpu.memory_space<vmem>>, vector<8x8x8xf32>
    %8 = arith.maximumf %6, %7 : vector<8x8x8xf32>
    %c1_15 = arith.constant 1 : index
    %c0_16 = arith.constant 0 : index
    %c0_17 = arith.constant 0 : index
    %9 = tpu.strided_load %arg3[%c1_15, %c0_16, %c0_17] {strides = array<i32: 2, 2, 1>} : memref<18x18x8xf32, #tpu.memory_space<vmem>>, vector<8x8x8xf32>
    %10 = arith.maximumf %8, %9 : vector<8x8x8xf32>
    %c1_18 = arith.constant 1 : index
    %c1_19 = arith.constant 1 : index
    %c0_20 = arith.constant 0 : index
    %11 = tpu.strided_load %arg3[%c1_18, %c1_19, %c0_20] {strides = array<i32: 2, 2, 1>} : memref<18x18x8xf32, #tpu.memory_space<vmem>>, vector<8x8x8xf32>
    %12 = arith.maximumf %10, %11 : vector<8x8x8xf32>
    %c1_21 = arith.constant 1 : index
    %c2_22 = arith.constant 2 : index
    %c0_23 = arith.constant 0 : index
    %13 = tpu.strided_load %arg3[%c1_21, %c2_22, %c0_23] {strides = array<i32: 2, 2, 1>} : memref<18x18x8xf32, #tpu.memory_space<vmem>>, vector<8x8x8xf32>
    %14 = arith.maximumf %12, %13 : vector<8x8x8xf32>
    %c2_24 = arith.constant 2 : index
    %c0_25 = arith.constant 0 : index
    %c0_26 = arith.constant 0 : index
    %15 = tpu.strided_load %arg3[%c2_24, %c0_25, %c0_26] {strides = array<i32: 2, 2, 1>} : memref<18x18x8xf32, #tpu.memory_space<vmem>>, vector<8x8x8xf32>
    %16 = arith.maximumf %14, %15 : vector<8x8x8xf32>
    %c2_27 = arith.constant 2 : index
    %c1_28 = arith.constant 1 : index
    %c0_29 = arith.constant 0 : index
    %17 = tpu.strided_load %arg3[%c2_27, %c1_28, %c0_29] {strides = array<i32: 2, 2, 1>} : memref<18x18x8xf32, #tpu.memory_space<vmem>>, vector<8x8x8xf32>
    %18 = arith.maximumf %16, %17 : vector<8x8x8xf32>
    %c2_30 = arith.constant 2 : index
    %c2_31 = arith.constant 2 : index
    %c0_32 = arith.constant 0 : index
    %19 = tpu.strided_load %arg3[%c2_30, %c2_31, %c0_32] {strides = array<i32: 2, 2, 1>} : memref<18x18x8xf32, #tpu.memory_space<vmem>>, vector<8x8x8xf32>
    %20 = arith.maximumf %18, %19 : vector<8x8x8xf32>
    %c0_33 = arith.constant 0 : index
    %c0_34 = arith.constant 0 : index
    %c0_35 = arith.constant 0 : index
    %21 = vector.load %arg2[%c0_33, %c0_34, %c0_35] : memref<8x8x8xf32, #tpu.memory_space<vmem>>, vector<8x8x8xf32>
    tpu.vector_store %arg2[%c0_33, %c0_34, %c0_35], %20 {strides = array<i32>} : memref<8x8x8xf32, #tpu.memory_space<vmem>>, vector<8x8x8xf32>,
    return
  }
  func.func @transform_0(%arg0: i32) -> (i32, i32, i32) {
    %c0_i32 = arith.constant 0 : i32
    %c0_i32_0 = arith.constant 0 : i32
    %c0_i32_1 = arith.constant 0 : i32
    return %c0_i32, %c0_i32_0, %arg0 : i32, i32, i32
  }
  func.func @transform_1(%arg0: i32) -> (i32, i32, i32) {
    %c0_i32 = arith.constant 0 : i32
    %c0_i32_0 = arith.constant 0 : i32
    %c0_i32_1 = arith.constant 0 : i32
    return %c0_i32, %c0_i32_0, %arg0 : i32, i32, i32
  }
}

</mosaic_0001>

<llo_original>
// kernel: tpu_custom_call.1
$region0: #{tpu_custom_call.1}
  #allocation0 [shape = 'u32[]', space=smem, size = 0x4, offset = 0x4, fixed_abs, tag = 'smem constant byte address 0x4 - core index']
  #allocation1 [shape = 'u32[72,128]{1,0:T(1,128)}', space=vmem, size = 0x9000, scoped, tag = 'internal scratch']
  #allocation2 [shape = 'f32[18,18,8]{2,1,0:T(8,128)}', space=vmem, size = 0x36000, scoped, tag = 'scratch operand']
  %s0 = inlined_call_operand.vmem [shape: f32[16,16,8], index: 0, kind: input, shape index: {}]
  %s1 = inlined_call_operand.hbm [shape: f32[8,8,8], index: 1, kind: output, shape index: {}]
  %s2 = sld [smem:[#allocation0]]
  $region14: #{tpu_custom_call.1} parent=0
    _
  %s4 = ssub.s32 1, %s2
  %s5 = scalar_select 0, %s4, %s2
  $region1: #{tpu_custom_call.1} parent=0
    #allocation3 [shape = 'u8[32768]{0}', space=vmem, size = 0x8000, scoped, tag = 'output window, operand 0, single buffered']
    #allocation4 [shape = 's32[1]{0}', space=sflag, size = 0x4, scoped, tag = 'scoped memory for tpu_custom_call.1']
    %6 = vsyncpa [#allocation4], 0
    // Predicated region
    $region2: #{tpu_custom_call.1} parent=1 // pred_check
      _
    $region3: #{tpu_custom_call.1} parent=1 // pred_check_branch
      %8 = sbr.rel (0) target = $region5
    $region4: #{tpu_custom_call.1} parent=1 // pred_region
      _
    $region5: #{tpu_custom_call.1} parent=1 // pred_fallthru
      _
    %vm9 = vcmask 64512
    %10 = vst.msk [vmem:[#allocation2] sm:$0xff] %vm9, -inf
    %11 = vst.msk [vmem:[#allocation2 + $0x8] sm:$0xff] %vm9, -inf
    %vm12 = vcmask 58368
    %13 = vst.msk [vmem:[#allocation2 + $0x10] sm:$0x3] %vm12, -inf
    %14 = vst.msk [vmem:[#allocation2 + $0x18] sm:$0xff] %vm9, -inf
    %15 = vst.msk [vmem:[#allocation2 + $0x20] sm:$0xff] %vm9, -inf
    %16 = vst.msk [vmem:[#allocation2 + $0x28] sm:$0x3] %vm12, -inf
    %17 = vst.msk [vmem:[#allocation2 + $0x30] sm:$0xff] %vm9, -inf
    %18 = vst.msk [vmem:[#allocation2 + $0x38] sm:$0xff] %vm9, -inf
    %19 = vst.msk [vmem:[#allocation2 + $0x40] sm:$0x3] %vm12, -inf
    %20 = vst.msk [vmem:[#allocation2 + $0x48] sm:$0xff] %vm9, -inf
    %21 = vst.msk [vmem:[#allocation2 + $0x50] sm:$0xff] %vm9, -inf
    %22 = vst.msk [vmem:[#allocation2 + $0x58] sm:$0x3] %vm12, -inf
    %23 = vst.msk [vmem:[#allocation2 + $0x60] sm:$0xff] %vm9, -inf
    %24 = vst.msk [vmem:[#allocation2 + $0x68] sm:$0xff] %vm9, -inf
    %25 = vst.msk [vmem:[#allocation2 + $0x70] sm:$0x3] %vm12, -inf
    %26 = vst.msk [vmem:[#allocation2 + $0x78] sm:$0xff] %vm9, -inf
    %27 = vst.msk [vmem:[#allocation2 + $0x80] sm:$0xff] %vm9, -inf
    %28 = vst.msk [vmem:[#allocation2 + $0x88] sm:$0x3] %vm12, -inf
    %29 = vst.msk [vmem:[#allocation2 + $0x90] sm:$0xff] %vm9, -inf
    %30 = vst.msk [vmem:[#allocation2 + $0x98] sm:$0xff] %vm9, -inf
    %31 = vst.msk [vmem:[#allocation2 + $0xa0] sm:$0x3] %vm12, -inf
    %32 = vst.msk [vmem:[#allocation2 + $0xa8] sm:$0xff] %vm9, -inf
    %33 = vst.msk [vmem:[#allocation2 + $0xb0] sm:$0xff] %vm9, -inf
    %34 = vst.msk [vmem:[#allocation2 + $0xb8] sm:$0x3] %vm12, -inf
    %35 = vst.msk [vmem:[#allocation2 + $0xc0] sm:$0xff] %vm9, -inf
    %36 = vst.msk [vmem:[#allocation2 + $0xc8] sm:$0xff] %vm9, -inf
    %37 = vst.msk [vmem:[#allocation2 + $0xd0] sm:$0x3] %vm12, -inf
    %38 = vst.msk [vmem:[#allocation2 + $0xd8] sm:$0xff] %vm9, -inf
    %39 = vst.msk [vmem:[#allocation2 + $0xe0] sm:$0xff] %vm9, -inf
    %40 = vst.msk [vmem:[#allocation2 + $0xe8] sm:$0x3] %vm12, -inf
    %41 = vst.msk [vmem:[#allocation2 + $0xf0] sm:$0xff] %vm9, -inf
    %42 = vst.msk [vmem:[#allocation2 + $0xf8] sm:$0xff] %vm9, -inf
    %43 = vst.msk [vmem:[#allocation2 + $0x100] sm:$0x3] %vm12, -inf
    %44 = vst.msk [vmem:[#allocation2 + $0x108] sm:$0xff] %vm9, -inf
    %45 = vst.msk [vmem:[#allocation2 + $0x110] sm:$0xff] %vm9, -inf
    %46 = vst.msk [vmem:[#allocation2 + $0x118] sm:$0x3] %vm12, -inf
    %47 = vst.msk [vmem:[#allocation2 + $0x120] sm:$0xff] %vm9, -inf
    %48 = vst.msk [vmem:[#allocation2 + $0x128] sm:$0xff] %vm9, -inf
    %49 = vst.msk [vmem:[#allocation2 + $0x130] sm:$0x3] %vm12, -inf
    %50 = vst.msk [vmem:[#allocation2 + $0x138] sm:$0xff] %vm9, -inf
    %51 = vst.msk [vmem:[#allocation2 + $0x140] sm:$0xff] %vm9, -inf
    %52 = vst.msk [vmem:[#allocation2 + $0x148] sm:$0x3] %vm12, -inf
    %53 = vst.msk [vmem:[#allocation2 + $0x150] sm:$0xff] %vm9, -inf
    %54 = vst.msk [vmem:[#allocation2 + $0x158] sm:$0xff] %vm9, -inf
    %55 = vst.msk [vmem:[#allocation2 + $0x160] sm:$0x3] %vm12, -inf
    %56 = vst.msk [vmem:[#allocation2 + $0x168] sm:$0xff] %vm9, -inf
    %57 = vst.msk [vmem:[#allocation2 + $0x170] sm:$0xff] %vm9, -inf
    %58 = vst.msk [vmem:[#allocation2 + $0x178] sm:$0x3] %vm12, -inf
    %59 = vst.msk [vmem:[#allocation2 + $0x180] sm:$0xff] %vm9, -inf
    %60 = vst.msk [vmem:[#allocation2 + $0x188] sm:$0xff] %vm9, -inf
    %61 = vst.msk [vmem:[#allocation2 + $0x190] sm:$0x3] %vm12, -inf
    %62 = vst.msk [vmem:[#allocation2 + $0x198] sm:$0xff] %vm9, -inf
    %63 = vst.msk [vmem:[#allocation2 + $0x1a0] sm:$0xff] %vm9, -inf
    %64 = vst.msk [vmem:[#allocation2 + $0x1a8] sm:$0x3] %vm12, -inf
    %v65 = vld [vmem:[%s0] sm:$0xff]
    %v66 = vld [vmem:[%s0 + $0x8] sm:$0xff]
    %v67 = vld [vmem:[%s0 + $0x10] sm:$0xff]
    %v68 = vld [vmem:[%s0 + $0x18] sm:$0xff]
    %v69 = vld [vmem:[%s0 + $0x20] sm:$0xff]
    %v70 = vld [vmem:[%s0 + $0x28] sm:$0xff]
    %v71 = vld [vmem:[%s0 + $0x30] sm:$0xff]
    %v72 = vld [vmem:[%s0 + $0x38] sm:$0xff]
    %v73 = vld [vmem:[%s0 + $0x40] sm:$0xff]
    %v74 = vld [vmem:[%s0 + $0x48] sm:$0xff]
    %v75 = vld [vmem:[%s0 + $0x50] sm:$0xff]
    %v76 = vld [vmem:[%s0 + $0x58] sm:$0xff]
    %v77 = vld [vmem:[%s0 + $0x60] sm:$0xff]
    %v78 = vld [vmem:[%s0 + $0x68] sm:$0xff]
    %v79 = vld [vmem:[%s0 + $0x70] sm:$0xff]
    %v80 = vld [vmem:[%s0 + $0x78] sm:$0xff]
    %v81 = vld [vmem:[%s0 + $0x80] sm:$0xff]
    %v82 = vld [vmem:[%s0 + $0x88] sm:$0xff]
    %v83 = vld [vmem:[%s0 + $0x90] sm:$0xff]
    %v84 = vld [vmem:[%s0 + $0x98] sm:$0xff]
    %v85 = vld [vmem:[%s0 + $0xa0] sm:$0xff]
    %v86 = vld [vmem:[%s0 + $0xa8] sm:$0xff]
    %v87 = vld [vmem:[%s0 + $0xb0] sm:$0xff]
    %v88 = vld [vmem:[%s0 + $0xb8] sm:$0xff]
    %v89 = vld [vmem:[%s0 + $0xc0] sm:$0xff]
    %v90 = vld [vmem:[%s0 + $0xc8] sm:$0xff]
    %v91 = vld [vmem:[%s0 + $0xd0] sm:$0xff]
    %v92 = vld [vmem:[%s0 + $0xd8] sm:$0xff]
    %v93 = vld [vmem:[%s0 + $0xe0] sm:$0xff]
    %v94 = vld [vmem:[%s0 + $0xe8] sm:$0xff]
    %v95 = vld [vmem:[%s0 + $0xf0] sm:$0xff]
    %v96 = vld [vmem:[%s0 + $0xf8] sm:$0xff]
    %s97 = scalar_lea.vmem [#allocation2], 24
    %98 = vst.msk [vmem:[%s97 + $0x1] sm:$0xff] %vm9, %v65
    %99 = vst.msk [vmem:[%s97 + $0x9] sm:$0xff] %vm9, %v66
    %100 = vst.msk [vmem:[%s97 + $0x19] sm:$0xff] %vm9, %v67
    %101 = vst.msk [vmem:[%s97 + $0x21] sm:$0xff] %vm9, %v68
    %102 = vst.msk [vmem:[%s97 + $0x31] sm:$0xff] %vm9, %v69
    %103 = vst.msk [vmem:[%s97 + $0x39] sm:$0xff] %vm9, %v70
    %104 = vst.msk [vmem:[%s97 + $0x49] sm:$0xff] %vm9, %v71
    %105 = vst.msk [vmem:[%s97 + $0x51] sm:$0xff] %vm9, %v72
    %106 = vst.msk [vmem:[%s97 + $0x61] sm:$0xff] %vm9, %v73
    %107 = vst.msk [vmem:[%s97 + $0x69] sm:$0xff] %vm9, %v74
    %108 = vst.msk [vmem:[%s97 + $0x79] sm:$0xff] %vm9, %v75
    %109 = vst.msk [vmem:[%s97 + $0x81] sm:$0xff] %vm9, %v76
    %110 = vst.msk [vmem:[%s97 + $0x91] sm:$0xff] %vm9, %v77
    %111 = vst.msk [vmem:[%s97 + $0x99] sm:$0xff] %vm9, %v78
    %112 = vst.msk [vmem:[%s97 + $0xa9] sm:$0xff] %vm9, %v79
    %113 = vst.msk [vmem:[%s97 + $0xb1] sm:$0xff] %vm9, %v80
    %114 = vst.msk [vmem:[%s97 + $0xc1] sm:$0xff] %vm9, %v81
    %115 = vst.msk [vmem:[%s97 + $0xc9] sm:$0xff] %vm9, %v82
    %116 = vst.msk [vmem:[%s97 + $0xd9] sm:$0xff] %vm9, %v83
    %117 = vst.msk [vmem:[%s97 + $0xe1] sm:$0xff] %vm9, %v84
    %118 = vst.msk [vmem:[%s97 + $0xf1] sm:$0xff] %vm9, %v85
    %119 = vst.msk [vmem:[%s97 + $0xf9] sm:$0xff] %vm9, %v86
    %120 = vst.msk [vmem:[%s97 + $0x109] sm:$0xff] %vm9, %v87
    %121 = vst.msk [vmem:[%s97 + $0x111] sm:$0xff] %vm9, %v88
    %122 = vst.msk [vmem:[%s97 + $0x121] sm:$0xff] %vm9, %v89
    %123 = vst.msk [vmem:[%s97 + $0x129] sm:$0xff] %vm9, %v90
    %124 = vst.msk [vmem:[%s97 + $0x139] sm:$0xff] %vm9, %v91
    %125 = vst.msk [vmem:[%s97 + $0x141] sm:$0xff] %vm9, %v92
    %126 = vst.msk [vmem:[%s97 + $0x151] sm:$0xff] %vm9, %v93
    %127 = vst.msk [vmem:[%s97 + $0x159] sm:$0xff] %vm9, %v94
    %128 = vst.msk [vmem:[%s97 + $0x169] sm:$0xff] %vm9, %v95
    %129 = vst.msk [vmem:[%s97 + $0x171] sm:$0xff] %vm9, %v96
    %v130 = vld [vmem:[#allocation2] ss:$2 sm:$0xff]
    %s131 = scalar_lea.vmem [#allocation2], 48
    %v132 = vld [vmem:[%s131] ss:$2 sm:$0xff]
    %s133 = scalar_lea.vmem [#allocation2], 96
    %v134 = vld [vmem:[%s133] ss:$2 sm:$0xff]
    %s135 = scalar_lea.vmem [#allocation2], 144
    %v136 = vld [vmem:[%s135] ss:$2 sm:$0xff]
    %s137 = scalar_lea.vmem [#allocation2], 192
    %v138 = vld [vmem:[%s137] ss:$2 sm:$0xff]
    %s139 = scalar_lea.vmem [#allocation2], 240
    %v140 = vld [vmem:[%s139] ss:$2 sm:$0xff]
    %s141 = scalar_lea.vmem [#allocation2], 288
    %v142 = vld [vmem:[%s141] ss:$2 sm:$0xff]
    %s143 = scalar_lea.vmem [#allocation2], 336
    %v144 = vld [vmem:[%s143] ss:$2 sm:$0xff]
    %s145 = scalar_lea.vmem [#allocation2], 1
    %v146 = vld [vmem:[%s145] ss:$2 sm:$0xff]
    %s147 = scalar_lea.vmem [#allocation2], 49
    %v148 = vld [vmem:[%s147] ss:$2 sm:$0xff]
    %s149 = scalar_lea.vmem [#allocation2], 97
    %v150 = vld [vmem:[%s149] ss:$2 sm:$0xff]
    %s151 = scalar_lea.vmem [#allocation2], 145
    %v152 = vld [vmem:[%s151] ss:$2 sm:$0xff]
    %s153 = scalar_lea.vmem [#allocation2], 193
    %v154 = vld [vmem:[%s153] ss:$2 sm:$0xff]
    %s155 = scalar_lea.vmem [#allocation2], 241
    %v156 = vld [vmem:[%s155] ss:$2 sm:$0xff]
    %s157 = scalar_lea.vmem [#allocation2], 289
    %v158 = vld [vmem:[%s157] ss:$2 sm:$0xff]
    %s159 = scalar_lea.vmem [#allocation2], 337
    %v160 = vld [vmem:[%s159] ss:$2 sm:$0xff]
    %v161 = vmax.f32 %v130, %v146
    %v162 = vmax.f32 %v132, %v148
    %v163 = vmax.f32 %v134, %v150
    %v164 = vmax.f32 %v136, %v152
    %v165 = vmax.f32 %v138, %v154
    %v166 = vmax.f32 %v140, %v156
    %v167 = vmax.f32 %v142, %v158
    %v168 = vmax.f32 %v144, %v160
    %s169 = scalar_lea.vmem [#allocation2], 2
    %v170 = vld [vmem:[%s169] ss:$2 sm:$0xff]
    %s171 = scalar_lea.vmem [#allocation2], 50
    %v172 = vld [vmem:[%s171] ss:$2 sm:$0xff]
    %s173 = scalar_lea.vmem [#allocation2], 98
    %v174 = vld [vmem:[%s173] ss:$2 sm:$0xff]
    %s175 = scalar_lea.vmem [#allocation2], 146
    %v176 = vld [vmem:[%s175] ss:$2 sm:$0xff]
    %s177 = scalar_lea.vmem [#allocation2], 194
    %v178 = vld [vmem:[%s177] ss:$2 sm:$0xff]
    %s179 = scalar_lea.vmem [#allocation2], 242
    %v180 = vld [vmem:[%s179] ss:$2 sm:$0xff]
    %s181 = scalar_lea.vmem [#allocation2], 290
    %v182 = vld [vmem:[%s181] ss:$2 sm:$0xff]
    %s183 = scalar_lea.vmem [#allocation2], 338
    %v184 = vld [vmem:[%s183] ss:$2 sm:$0xff]
    %v185 = vmax.f32 %v161, %v170
    %v186 = vmax.f32 %v162, %v172
    %v187 = vmax.f32 %v163, %v174
    %v188 = vmax.f32 %v164, %v176
    %v189 = vmax.f32 %v165, %v178
    %v190 = vmax.f32 %v166, %v180
    %v191 = vmax.f32 %v167, %v182
    %v192 = vmax.f32 %v168, %v184
    %v193 = vld [vmem:[%s97] ss:$2 sm:$0xff]
    %s194 = scalar_lea.vmem %s97, 48 [#allocation2]
    %v195 = vld [vmem:[%s194] ss:$2 sm:$0xff]
    %s196 = scalar_lea.vmem %s97, 96 [#allocation2]
    %v197 = vld [vmem:[%s196] ss:$2 sm:$0xff]
    %s198 = scalar_lea.vmem %s97, 144 [#allocation2]
    %v199 = vld [vmem:[%s198] ss:$2 sm:$0xff]
    %s200 = scalar_lea.vmem %s97, 192 [#allocation2]
    %v201 = vld [vmem:[%s200] ss:$2 sm:$0xff]
    %s202 = scalar_lea.vmem %s97, 240 [#allocation2]
    %v203 = vld [vmem:[%s202] ss:$2 sm:$0xff]
    %s204 = scalar_lea.vmem %s97, 288 [#allocation2]
    %v205 = vld [vmem:[%s204] ss:$2 sm:$0xff]
    %s206 = scalar_lea.vmem %s97, 336 [#allocation2]
    %v207 = vld [vmem:[%s206] ss:$2 sm:$0xff]
    %v208 = vmax.f32 %v185, %v193
    %v209 = vmax.f32 %v186, %v195
    %v210 = vmax.f32 %v187, %v197
    %v211 = vmax.f32 %v188, %v199
    %v212 = vmax.f32 %v189, %v201
    %v213 = vmax.f32 %v190, %v203
    %v214 = vmax.f32 %v191, %v205
    %v215 = vmax.f32 %v192, %v207
    %s216 = scalar_lea.vmem %s97, 1 [#allocation2]
    %v217 = vld [vmem:[%s216] ss:$2 sm:$0xff]
    %s218 = scalar_lea.vmem %s97, 49 [#allocation2]
    %v219 = vld [vmem:[%s218] ss:$2 sm:$0xff]
    %s220 = scalar_lea.vmem %s97, 97 [#allocation2]
    %v221 = vld [vmem:[%s220] ss:$2 sm:$0xff]
    %s222 = scalar_lea.vmem %s97, 145 [#allocation2]
    %v223 = vld [vmem:[%s222] ss:$2 sm:$0xff]
    %s224 = scalar_lea.vmem %s97, 193 [#allocation2]
    %v225 = vld [vmem:[%s224] ss:$2 sm:$0xff]
    %s226 = scalar_lea.vmem %s97, 241 [#allocation2]
    %v227 = vld [vmem:[%s226] ss:$2 sm:$0xff]
    %s228 = scalar_lea.vmem %s97, 289 [#allocation2]
    %v229 = vld [vmem:[%s228] ss:$2 sm:$0xff]
    %s230 = scalar_lea.vmem %s97, 337 [#allocation2]
    %v231 = vld [vmem:[%s230] ss:$2 sm:$0xff]
    %v232 = vmax.f32 %v208, %v217
    %v233 = vmax.f32 %v209, %v219
    %v234 = vmax.f32 %v210, %v221
    %v235 = vmax.f32 %v211, %v223
    %v236 = vmax.f32 %v212, %v225
    %v237 = vmax.f32 %v213, %v227
    %v238 = vmax.f32 %v214, %v229
    %v239 = vmax.f32 %v215, %v231
    %s240 = scalar_lea.vmem %s97, 2 [#allocation2]
    %v241 = vld [vmem:[%s240] ss:$2 sm:$0xff]
    %s242 = scalar_lea.vmem %s97, 50 [#allocation2]
    %v243 = vld [vmem:[%s242] ss:$2 sm:$0xff]
    %s244 = scalar_lea.vmem %s97, 98 [#allocation2]
    %v245 = vld [vmem:[%s244] ss:$2 sm:$0xff]
    %s246 = scalar_lea.vmem %s97, 146 [#allocation2]
    %v247 = vld [vmem:[%s246] ss:$2 sm:$0xff]
    %s248 = scalar_lea.vmem %s97, 194 [#allocation2]
    %v249 = vld [vmem:[%s248] ss:$2 sm:$0xff]
    %s250 = scalar_lea.vmem %s97, 242 [#allocation2]
    %v251 = vld [vmem:[%s250] ss:$2 sm:$0xff]
    %s252 = scalar_lea.vmem %s97, 290 [#allocation2]
    %v253 = vld [vmem:[%s252] ss:$2 sm:$0xff]
    %s254 = scalar_lea.vmem %s97, 338 [#allocation2]
    %v255 = vld [vmem:[%s254] ss:$2 sm:$0xff]
    %v256 = vmax.f32 %v232, %v241
    %v257 = vmax.f32 %v233, %v243
    %v258 = vmax.f32 %v234, %v245
    %v259 = vmax.f32 %v235, %v247
    %v260 = vmax.f32 %v236, %v249
    %v261 = vmax.f32 %v237, %v251
    %v262 = vmax.f32 %v238, %v253
    %v263 = vmax.f32 %v239, %v255
    %s264 = scalar_lea.vmem [#allocation2], 48
    %v265 = vld [vmem:[%s264] ss:$2 sm:$0xff]
    %s266 = scalar_lea.vmem %s264, 48 [#allocation2]
    %v267 = vld [vmem:[%s266] ss:$2 sm:$0xff]
    %s268 = scalar_lea.vmem %s264, 96 [#allocation2]
    %v269 = vld [vmem:[%s268] ss:$2 sm:$0xff]
    %s270 = scalar_lea.vmem %s264, 144 [#allocation2]
    %v271 = vld [vmem:[%s270] ss:$2 sm:$0xff]
    %s272 = scalar_lea.vmem %s264, 192 [#allocation2]
    %v273 = vld [vmem:[%s272] ss:$2 sm:$0xff]
    %s274 = scalar_lea.vmem %s264, 240 [#allocation2]
    %v275 = vld [vmem:[%s274] ss:$2 sm:$0xff]
    %s276 = scalar_lea.vmem %s264, 288 [#allocation2]
    %v277 = vld [vmem:[%s276] ss:$2 sm:$0xff]
    %s278 = scalar_lea.vmem %s264, 336 [#allocation2]
    %v279 = vld [vmem:[%s278] ss:$2 sm:$0xff]
    %v280 = vmax.f32 %v256, %v265
    %v281 = vmax.f32 %v257, %v267
    %v282 = vmax.f32 %v258, %v269
    %v283 = vmax.f32 %v259, %v271
    %v284 = vmax.f32 %v260, %v273
    %v285 = vmax.f32 %v261, %v275
    %v286 = vmax.f32 %v262, %v277
    %v287 = vmax.f32 %v263, %v279
    %s288 = scalar_lea.vmem %s264, 1 [#allocation2]
    %v289 = vld [vmem:[%s288] ss:$2 sm:$0xff]
    %s290 = scalar_lea.vmem %s264, 49 [#allocation2]
    %v291 = vld [vmem:[%s290] ss:$2 sm:$0xff]
    %s292 = scalar_lea.vmem %s264, 97 [#allocation2]
    %v293 = vld [vmem:[%s292] ss:$2 sm:$0xff]
    %s294 = scalar_lea.vmem %s264, 145 [#allocation2]
    %v295 = vld [vmem:[%s294] ss:$2 sm:$0xff]
    %s296 = scalar_lea.vmem %s264, 193 [#allocation2]
    %v297 = vld [vmem:[%s296] ss:$2 sm:$0xff]
    %s298 = scalar_lea.vmem %s264, 241 [#allocation2]
    %v299 = vld [vmem:[%s298] ss:$2 sm:$0xff]
    %s300 = scalar_lea.vmem %s264, 289 [#allocation2]
    %v301 = vld [vmem:[%s300] ss:$2 sm:$0xff]
    %s302 = scalar_lea.vmem %s264, 337 [#allocation2]
    %v303 = vld [vmem:[%s302] ss:$2 sm:$0xff]
    %v304 = vmax.f32 %v280, %v289
    %v305 = vmax.f32 %v281, %v291
    %v306 = vmax.f32 %v282, %v293
    %v307 = vmax.f32 %v283, %v295
    %v308 = vmax.f32 %v284, %v297
    %v309 = vmax.f32 %v285, %v299
    %v310 = vmax.f32 %v286, %v301
    %v311 = vmax.f32 %v287, %v303
    %s312 = scalar_lea.vmem %s264, 2 [#allocation2]
    %v313 = vld [vmem:[%s312] ss:$2 sm:$0xff]
    %s314 = scalar_lea.vmem %s264, 50 [#allocation2]
    %v315 = vld [vmem:[%s314] ss:$2 sm:$0xff]
    %s316 = scalar_lea.vmem %s264, 98 [#allocation2]
    %v317 = vld [vmem:[%s316] ss:$2 sm:$0xff]
    %s318 = scalar_lea.vmem %s264, 146 [#allocation2]
    %v319 = vld [vmem:[%s318] ss:$2 sm:$0xff]
    %s320 = scalar_lea.vmem %s264, 194 [#allocation2]
    %v321 = vld [vmem:[%s320] ss:$2 sm:$0xff]
    %s322 = scalar_lea.vmem %s264, 242 [#allocation2]
    %v323 = vld [vmem:[%s322] ss:$2 sm:$0xff]
    %s324 = scalar_lea.vmem %s264, 290 [#allocation2]
    %v325 = vld [vmem:[%s324] ss:$2 sm:$0xff]
    %s326 = scalar_lea.vmem %s264, 338 [#allocation2]
    %v327 = vld [vmem:[%s326] ss:$2 sm:$0xff]
    %v328 = vmax.f32 %v304, %v313
    %v329 = vmax.f32 %v305, %v315
    %v330 = vmax.f32 %v306, %v317
    %v331 = vmax.f32 %v307, %v319
    %v332 = vmax.f32 %v308, %v321
    %v333 = vmax.f32 %v309, %v323
    %v334 = vmax.f32 %v310, %v325
    %v335 = vmax.f32 %v311, %v327
    %336 = vst.msk [vmem:[#allocation3] sm:$0xff] %vm9, %v328
    %337 = vst.msk [vmem:[#allocation3 + $0x8] sm:$0xff] %vm9, %v329
    %338 = vst.msk [vmem:[#allocation3 + $0x10] sm:$0xff] %vm9, %v330
    %339 = vst.msk [vmem:[#allocation3 + $0x18] sm:$0xff] %vm9, %v331
    %340 = vst.msk [vmem:[#allocation3 + $0x20] sm:$0xff] %vm9, %v332
    %341 = vst.msk [vmem:[#allocation3 + $0x28] sm:$0xff] %vm9, %v333
    %342 = vst.msk [vmem:[#allocation3 + $0x30] sm:$0xff] %vm9, %v334
    %343 = vst.msk [vmem:[#allocation3 + $0x38] sm:$0xff] %vm9, %v335
    // Predicated region
    $region6: #{tpu_custom_call.1} parent=1 // pred_check
      _
    $region7: #{tpu_custom_call.1} parent=1 // pred_check_branch
      %345 = sbr.rel (0) target = $region9
    $region8: #{tpu_custom_call.1} parent=1 // pred_region
      %347 = vsyncadd [#allocation4], 0
      %s348 = sshll.u32 [#allocation3], 4
      %s349 = int_to_ptr.vmem [resolvable:$true] %s348
      %s350 = sshll.u32 %s1, 4
      %s351 = int_to_ptr.hbm [resolvable:$true] %s350
      %356 = dma.vmem_to_hbm [thread:$0]  %s349, 1024, %s351, [#allocation4], 128, 128, 8
    $region9: #{tpu_custom_call.1} parent=1 // pred_fallthru
      _
    // Predicated region
    $region10: #{tpu_custom_call.1} parent=1 // pred_check
      _
    $region11: #{tpu_custom_call.1} parent=1 // pred_check_branch
      %358 = sbr.rel (0) target = $region13
    $region12: #{tpu_custom_call.1} parent=1 // pred_region
      %360 = dma.done [#allocation4], 1024
    $region13: #{tpu_custom_call.1} parent=1 // pred_fallthru
      _
    %361 = vsyncpa [#allocation4], 1

</llo_original>
